<compile_context>
chip_gen: v5e
topology: v5e:2x2
jax: 0.10.0
libtpu: 0.0.40
codegen_flags: <defaults>
</compile_context>

<pallas_src>
import math
from functools import partial

import jax
import jax.numpy as jnp
from jax.experimental import pallas as pl
from jax.experimental.pallas import tpu as pltpu


# which reductions each branch needs: (need_sym, need_soft, need_ce)
_MODE_FLAGS = {
    'l_st':      (True,  False, True),
    'u_st':      (True,  False, False),
    'l_te':      (False, True,  True),
    'u_te':      (False, True,  False),
    'l_te_eval': (False, False, True),
}


# ----------------------------------------------------------------------------
# Pallas kernel builder: branch-specialized reductions, batch-tiled grid.
# ----------------------------------------------------------------------------
def _build_kernel(n_rows, tile_n, c, need_sym, need_soft, need_ce,
                  need_logits, needs_mask):
    def kernel(*refs):
        i = 0
        labels_ref = None
        if need_ce:
            labels_ref = refs[i]
            i += 1
        pred_ref = refs[i]
        i += 1
        logits_ref = None
        if need_logits:
            logits_ref = refs[i]
            i += 1
        out_ref = refs[i]   # SMEM (3,) f32 accumulator: [sym_sse, soft_sse, ce_sum]

        step = pl.program_id(0)

        @pl.when(step == 0)
        def _init():
            out_ref[0] = jnp.float32(0.0)
            out_ref[1] = jnp.float32(0.0)
            out_ref[2] = jnp.float32(0.0)

        pred = pred_ref[...].astype(jnp.float32)          # (tile_n, C)
        logits = None
        if need_logits:
            logits = logits_ref[...].astype(jnp.float32)  # (tile_n, C)

        vmask = None
        if needs_mask:
            row = step * tile_n + jax.lax.broadcasted_iota(
                jnp.int32, (tile_n, 1), 0)
            vmask = row < n_rows                           # (tile_n, 1) bool
            pred = jnp.where(vmask, pred, 0.0)
            if need_logits:
                logits = jnp.where(vmask, logits, 0.0)
            # zeroed padded rows contribute 0 to the squared-diff terms and
            # give identical (uniform) softmaxes, so the MSE terms need no
            # further masking; CE uses label=-1 masking below.

        # --- symmetric MSE numerator: sum((logits - pred)^2) -----------------
        if need_sym:
            d = logits - pred
            out_ref[0] += jnp.sum(d * d)

        # --- shared softmax(pred) / log-sum-exp(pred) pass -------------------
        if need_soft or need_ce:
            m_p = jnp.max(pred, axis=1, keepdims=True)
            e_p = jnp.exp(pred - m_p)
            s_p = jnp.sum(e_p, axis=1, keepdims=True)

        # --- softmax MSE numerator: sum((softmax(logits)-softmax(pred))^2) ---
        if need_soft:
            sm_p = e_p * pl.reciprocal(s_p, approx=True)
            m_l = jnp.max(logits, axis=1, keepdims=True)
            e_l = jnp.exp(logits - m_l)
            s_l = jnp.sum(e_l, axis=1, keepdims=True)
            sm_l = e_l * pl.reciprocal(s_l, approx=True)
            ds = sm_l - sm_p
            out_ref[1] += jnp.sum(ds * ds)

        # --- cross entropy (sum): -sum_i log_softmax(pred)[i, y_i] -----------
        if need_ce:
            lab = labels_ref[...]                          # (tile_n, 1) int32
            if needs_mask:
                lab = jnp.where(vmask, lab, -1)            # padded rows -> no class
            cls_iota = jax.lax.broadcasted_iota(jnp.int32, (tile_n, c), 1)
            onehot = (cls_iota == lab).astype(jnp.float32)
            logp = (pred - m_p) - jnp.log(s_p)
            out_ref[2] += -jnp.sum(onehot * logp)

    return kernel


def _pick_tile_rows(n, c):
    # ~2 MiB per input block => 2 inputs x 2 double-buffers stays far below the
    # 32 MiB scoped-VMEM default (and v7x's 64 MiB physical VMEM).
    budget = 2 * 1024 * 1024
    rows = (budget // (c * 4)) // 8 * 8
    rows = max(8, min(1024, rows))
    if n <= rows:
        return n
    return rows


def _mtloss_sums(pred, logits, labels, mode):
    """Returns (sym_sse, soft_sse, ce_sum) f32 scalars (unneeded terms are 0)."""
    need_sym, need_soft, need_ce = _MODE_FLAGS[mode]
    need_logits = need_sym or need_soft
    n, c = pred.shape

    tile_n = _pick_tile_rows(n, c)
    grid = pl.cdiv(n, tile_n)
    needs_mask = (grid * tile_n) != n

    kernel = _build_kernel(n, tile_n, c, need_sym, need_soft, need_ce,
                           need_logits, needs_mask)

    args = []
    in_specs = []
    if need_ce:
        lab2d = labels.astype(jnp.int32).reshape(n, 1)
        args.append(lab2d)
        in_specs.append(pl.BlockSpec((tile_n, 1), lambda i: (i, 0)))
    args.append(pred)
    in_specs.append(pl.BlockSpec((tile_n, c), lambda i: (i, 0)))
    if need_logits:
        args.append(logits)
        in_specs.append(pl.BlockSpec((tile_n, c), lambda i: (i, 0)))

    out = pl.pallas_call(
        kernel,
        out_shape=jax.ShapeDtypeStruct((3,), jnp.float32),
        grid=(grid,),
        in_specs=in_specs,
        out_specs=pl.BlockSpec((3,), lambda i: (0,),
                               memory_space=pltpu.MemorySpace.SMEM),
        compiler_params=pltpu.CompilerParams(
            dimension_semantics=("arbitrary",),
            vmem_limit_bytes=32 * 1024 * 1024,
        ),
    )(*args)
    return out[0], out[1], out[2]


# ----------------------------------------------------------------------------
# One fused jit per branch: labels prep, pallas kernel, scalar combination.
# ----------------------------------------------------------------------------
@partial(jax.jit, static_argnames=('mode',))
def _mtloss_forward(pred, logits, labels, cons_weight, logit_distance_cost, *,
                    mode):
    need_sym, need_soft, need_ce = _MODE_FLAGS[mode]
    n, c = pred.shape

    sym_sse, soft_sse, ce_sum = _mtloss_sums(pred, logits, labels, mode)

    denom_cls = float(n) if mode == 'l_te_eval' else float(n * 2)
    loss_cls = (ce_sum / denom_cls) if need_ce else None
    # symmetric_mse_loss(x, y) = sum((x-y)^2) / C
    loss_aug = (logit_distance_cost * (sym_sse / c) / float(n * 2)) if need_sym else None
    # softmax_mse_loss(x, y) = sum((softmax(x)-softmax(y))^2) / C
    loss_st = (cons_weight * (soft_sse / c) / float(n * 2)) if need_soft else None

    terms = [t for t in (loss_cls, loss_st, loss_aug) if t is not None]
    total = terms[0]
    for t in terms[1:]:
        total = total + t
    return total, loss_cls, loss_aug, loss_st


# ----------------------------------------------------------------------------
# Python-side module mirroring MTLoss.forward (branch logic / bookkeeping).
# ----------------------------------------------------------------------------
def sigmoid_rampup(current, rampup_length):
    """Standard mean-teacher sigmoid rampup (exp(-5 * (1 - t)^2))."""
    if rampup_length == 0:
        return 1.0
    current = max(0.0, min(float(current), float(rampup_length)))
    phase = 1.0 - current / rampup_length
    return float(math.exp(-5.0 * phase * phase))


class MTLossPallas:
    def __init__(self, alpha_cls=1.0, consistency=10, consistency_rampup=5,
                 logit_distance_cost=0.01):
        self._alpha_cls = alpha_cls
        self._logit_distance_cost = logit_distance_cost
        self.consistency_rampup = consistency_rampup
        self._consistency = consistency
        self._losses = {'loss': None, 'loss_aug_cons': None, 'loss_s_t_cons': None}
        self._count = 0

    def get_current_consistency_weight(self):
        return self._consistency * sigmoid_rampup(self._count, self.consistency_rampup)

    def __call__(self, pred, target):
        name = target['name']
        if name not in _MODE_FLAGS:
            raise ValueError('Unknown target name {}'.format(name))
        need_sym, need_soft, need_ce = _MODE_FLAGS[name]

        labels = target.get('target', None) if need_ce else None
        if need_ce and labels is None:
            raise ValueError("branch '{}' requires target['target']".format(name))
        logits = target.get('logits', None) if (need_sym or need_soft) else None
        if (need_sym or need_soft) and logits is None:
            raise ValueError("branch '{}' requires target['logits']".format(name))

        cons_w = self.get_current_consistency_weight() if need_soft else 0.0

        loss, loss_cls, loss_aug, loss_st = _mtloss_forward(
            pred, logits, labels,
            jnp.float32(cons_w), jnp.float32(self._logit_distance_cost),
            mode=name)

        self._losses['loss_cls'] = loss_cls
        self._losses['loss_aug_cons'] = loss_aug
        self._losses['loss_s_t_cons'] = loss_st
        self._losses['loss'] = loss
        self._count += 1
        return loss

    def get_loss_by_name(self, name):
        return self._losses.get(name, None)


# ----------------------------------------------------------------------------
# Main
# ----------------------------------------------------------------------------
if __name__ == "__main__":
    key = jax.random.PRNGKey(0)
    k1, k2, k3 = jax.random.split(key, 3)

    N, C = 2, 4                                   # batch=2, classes=4
    pred = jax.random.normal(k1, (N, C), dtype=jnp.float32)
    st_logits = jax.random.normal(k2, (N, C), dtype=jnp.float32)
    target_cls = jax.random.randint(k3, (N,), 0, C)

    # TODO(synk): for very small C (<128) a lane-packed layout (folding rows
    # into the 128-lane axis) would raise vector utilization further.

    loss_mod = MTLossPallas(alpha_cls=1.0, consistency=10,
                            consistency_rampup=5, logit_distance_cost=0.01)

    # Exercise every branch (each is a distinct static kernel specialization).
    loss_l_st = loss_mod(pred, {'name': 'l_st', 'target': target_cls,
                                'logits': st_logits})
    jax.block_until_ready(loss_l_st)

    loss_l_te = loss_mod(pred, {'name': 'l_te', 'target': target_cls,
                                'logits': st_logits})
    jax.block_until_ready(loss_l_te)

    loss_u_te = loss_mod(pred, {'name': 'u_te', 'logits': st_logits})
    jax.block_until_ready(loss_u_te)

    loss_eval = loss_mod(pred, {'name': 'l_te_eval', 'target': target_cls})
    jax.block_until_ready(loss_eval)

    # ---- lightweight pure-JAX reference check (lenient tolerance) ----------
    def ref_ce_sum(p, y):
        logp = jax.nn.log_softmax(p.astype(jnp.float32), axis=1)
        return -jnp.sum(logp[jnp.arange(p.shape[0]), y])

    def ref_sym(a, b):
        return jnp.sum((a - b) ** 2) / C

    def ref_soft(a, b):
        return jnp.sum((jax.nn.softmax(a, axis=1) - jax.nn.softmax(b, axis=1)) ** 2) / C

    mb2 = N * 2
    ref_l_st = ref_ce_sum(pred, target_cls) / mb2 + 0.01 * (ref_sym(st_logits, pred) / mb2)
    w_l_te = 10 * sigmoid_rampup(1, 5)            # 'l_te' was the 2nd call (count=1)
    ref_l_te = ref_ce_sum(pred, target_cls) / mb2 + w_l_te * (ref_soft(st_logits, pred) / mb2)

    def _close(a, b, rtol=1e-2, atol=1e-5):
        a, b = float(a), float(b)
        return abs(a - b) <= atol + rtol * max(1.0, abs(b))

    assert _close(loss_l_st, ref_l_st), (float(loss_l_st), float(ref_l_st))
    assert _close(loss_l_te, ref_l_te), (float(loss_l_te), float(ref_l_te))

    print("KERNEL_OK")
</pallas_src>

<mosaic_0001>
module attributes {stable_mosaic.version = 11 : i64} {
  func.func @kernel(%arg0: i32, %arg1: memref<2x1xi32, #tpu.memory_space<vmem>>, %arg2: memref<2x4xf32, #tpu.memory_space<vmem>>, %arg3: memref<2x4xf32, #tpu.memory_space<vmem>>, %arg4: memref<3xf32, #tpu.memory_space<smem>>) attributes {dimension_semantics = [#tpu.dimension_semantics<arbitrary>], iteration_bounds = array<i64: 1>, scalar_prefetch = 0 : i64, scratch_operands = 0 : i64, tpu.core_type = #tpu.core_type<tc>, window_params = [{transform_indices = @transform_0, window_bounds = array<i64: 2, 1>}, {transform_indices = @transform_1, window_bounds = array<i64: 2, 4>}, {transform_indices = @transform_2, window_bounds = array<i64: 2, 4>}, {transform_indices = @transform_3, window_bounds = array<i64: 3>}]} {
    %c0_i32 = arith.constant 0 : i32
    %0 = arith.cmpi eq, %arg0, %c0_i32 : i32
    %1 = arith.extui %0 : i1 to i32
    %c0_i32_0 = arith.constant 0 : i32
    %2 = arith.cmpi ne, %1, %c0_i32_0 : i32
    scf.if %2 {
      %cst_13 = arith.constant 0.000000e+00 : f32
      %c0_14 = arith.constant 0 : index
      %41 = memref.load %arg4[%c0_14] : memref<3xf32, #tpu.memory_space<smem>>
      memref.store %cst_13, %arg4[%c0_14] : memref<3xf32, #tpu.memory_space<smem>>
      %cst_15 = arith.constant 0.000000e+00 : f32
      %c1 = arith.constant 1 : index
      %42 = memref.load %arg4[%c1] : memref<3xf32, #tpu.memory_space<smem>>
      memref.store %cst_15, %arg4[%c1] : memref<3xf32, #tpu.memory_space<smem>>
      %cst_16 = arith.constant 0.000000e+00 : f32
      %c2_17 = arith.constant 2 : index
      %43 = memref.load %arg4[%c2_17] : memref<3xf32, #tpu.memory_space<smem>>
      memref.store %cst_16, %arg4[%c2_17] : memref<3xf32, #tpu.memory_space<smem>>
    } else {
    }
    %c0 = arith.constant 0 : index
    %c0_1 = arith.constant 0 : index
    %3 = vector.load %arg2[%c0, %c0_1] : memref<2x4xf32, #tpu.memory_space<vmem>>, vector<2x4xf32>
    %c0_2 = arith.constant 0 : index
    %c0_3 = arith.constant 0 : index
    %4 = vector.load %arg3[%c0_2, %c0_3] : memref<2x4xf32, #tpu.memory_space<vmem>>, vector<2x4xf32>
    %5 = arith.subf %4, %3 : vector<2x4xf32>
    %c0_4 = arith.constant 0 : index
    %6 = memref.load %arg4[%c0_4] : memref<3xf32, #tpu.memory_space<smem>>
    %7 = arith.mulf %5, %5 : vector<2x4xf32>
    %8 = vector.shape_cast %7 : vector<2x4xf32> to vector<1x2x4xf32>
    %cst = arith.constant dense<0.000000e+00> : vector<1xf32>
    %9 = vector.multi_reduction <add>, %8, %cst [1, 2] : vector<1x2x4xf32> to vector<1xf32>
    %10 = vector.shape_cast %9 : vector<1xf32> to vector<1x1x1xf32>
    %11 = vector.extract %10[0, 0, 0] : f32 from vector<1x1x1xf32>
    %12 = arith.addf %6, %11 : f32
    %c0_5 = arith.constant 0 : index
    %13 = memref.load %arg4[%c0_5] : memref<3xf32, #tpu.memory_space<smem>>
    memref.store %12, %arg4[%c0_5] : memref<3xf32, #tpu.memory_space<smem>>
    %cst_6 = arith.constant dense<0xFF800000> : vector<2xf32>
    %14 = vector.multi_reduction <maximumf>, %3, %cst_6 [1] : vector<2x4xf32> to vector<2xf32>
    %15 = vector.shape_cast %14 : vector<2xf32> to vector<2x1xf32>
    %16 = vector.broadcast %15 : vector<2x1xf32> to vector<2x4xf32>
    %17 = arith.subf %3, %16 : vector<2x4xf32>
    %18 = math.exp %17 : vector<2x4xf32>
    %cst_7 = arith.constant dense<0.000000e+00> : vector<2xf32>
    %19 = vector.multi_reduction <add>, %18, %cst_7 [1] : vector<2x4xf32> to vector<2xf32>
    %20 = vector.shape_cast %19 : vector<2xf32> to vector<2x1xf32>
    %c0_8 = arith.constant 0 : index
    %c0_9 = arith.constant 0 : index
    %21 = vector.load %arg1[%c0_8, %c0_9] : memref<2x1xi32, #tpu.memory_space<vmem>>, vector<2x1xi32>
    %22 = tpu.iota {dimensions = array<i32: 1>} : vector<2x4xi32>
    %23 = vector.broadcast %21 : vector<2x1xi32> to vector<2x4xi32>
    %24 = arith.cmpi eq, %22, %23 : vector<2x4xi32>
    %25 = arith.extui %24 : vector<2x4xi1> to vector<2x4xi32>
    %26 = arith.sitofp %25 : vector<2x4xi32> to vector<2x4xf32>
    %27 = vector.broadcast %15 : vector<2x1xf32> to vector<2x4xf32>
    %28 = arith.subf %3, %27 : vector<2x4xf32>
    %29 = math.log %20 : vector<2x1xf32>
    %30 = vector.broadcast %29 : vector<2x1xf32> to vector<2x4xf32>
    %31 = arith.subf %28, %30 : vector<2x4xf32>
    %c2 = arith.constant 2 : index
    %32 = memref.load %arg4[%c2] : memref<3xf32, #tpu.memory_space<smem>>
    %33 = arith.mulf %26, %31 : vector<2x4xf32>
    %34 = vector.shape_cast %33 : vector<2x4xf32> to vector<1x2x4xf32>
    %cst_10 = arith.constant dense<0.000000e+00> : vector<1xf32>
    %35 = vector.multi_reduction <add>, %34, %cst_10 [1, 2] : vector<1x2x4xf32> to vector<1xf32>
    %36 = vector.shape_cast %35 : vector<1xf32> to vector<1x1x1xf32>
    %37 = vector.extract %36[0, 0, 0] : f32 from vector<1x1x1xf32>
    %cst_11 = arith.constant 0.000000e+00 : f32
    %38 = arith.subf %cst_11, %37 : f32
    %39 = arith.addf %32, %38 : f32
    %c2_12 = arith.constant 2 : index
    %40 = memref.load %arg4[%c2_12] : memref<3xf32, #tpu.memory_space<smem>>
    memref.store %39, %arg4[%c2_12] : memref<3xf32, #tpu.memory_space<smem>>
    return
  }
  func.func @transform_0(%arg0: i32) -> (i32, i32) {
    %c0_i32 = arith.constant 0 : i32
    %c0_i32_0 = arith.constant 0 : i32
    return %arg0, %c0_i32 : i32, i32
  }
  func.func @transform_1(%arg0: i32) -> (i32, i32) {
    %c0_i32 = arith.constant 0 : i32
    %c0_i32_0 = arith.constant 0 : i32
    return %arg0, %c0_i32 : i32, i32
  }
  func.func @transform_2(%arg0: i32) -> (i32, i32) {
    %c0_i32 = arith.constant 0 : i32
    %c0_i32_0 = arith.constant 0 : i32
    return %arg0, %c0_i32 : i32, i32
  }
  func.func @transform_3(%arg0: i32) -> i32 {
    %c0_i32 = arith.constant 0 : i32
    %c0_i32_0 = arith.constant 0 : i32
    return %c0_i32 : i32
  }
}

</mosaic_0001>

<llo_original>
// kernel: _mtloss_forward.1
$region0: #{_mtloss_forward.1}
  #allocation0 [shape = 'u32[]', space=smem, size = 0x4, offset = 0x4, fixed_abs, tag = 'smem constant byte address 0x4 - core index']
  #allocation1 [shape = 'u32[72,128]{1,0:T(1,128)}', space=vmem, size = 0x9000, scoped, tag = 'internal scratch']
  %s0 = inlined_call_operand.vmem [shape: s32[2,1], index: 0, kind: input, shape index: {}]
  %s1 = inlined_call_operand.vmem [shape: f32[2,4], index: 1, kind: input, shape index: {}]
  %s2 = inlined_call_operand.hbm [shape: f32[2,4], index: 2, kind: input, shape index: {}]
  %s3 = inlined_call_operand.vmem [shape: f32[3], index: 3, kind: output, shape index: {}]
  %s4 = sld [smem:[#allocation0]]
  $region30: #{_mtloss_forward.1} parent=0
    _
  %s6 = ssub.s32 1, %s4
  %s7 = scalar_select 0, %s6, %s4
  $region1: #{_mtloss_forward.1} parent=0
    #allocation2 [shape = 'u8[1024]{0}', space=vmem, size = 0x400, scoped, tag = 'input window, operand 2, single buffered']
    #allocation3 [shape = 's32[1]{0}', space=sflag, size = 0x4, scoped, tag = 'scoped memory for _mtloss_forward.1']
    #allocation4 [shape = 's32[1]{0}', space=sflag, size = 0x4, scoped, tag = 'scoped memory for _mtloss_forward.1']
    #allocation5 [shape = 'u8[512]{0}', space=smem, size = 0x200, scoped, tag = 'output window, operand 0, single buffered']
    %8 = vsyncpa [#allocation3], 0
    %9 = vsyncpa [#allocation4], 0
    // Predicated region
    $region2: #{_mtloss_forward.1} parent=1 // pred_check
      _
    $region3: #{_mtloss_forward.1} parent=1 // pred_check_branch
      %11 = sbr.rel (0) target = $region5
    $region4: #{_mtloss_forward.1} parent=1 // pred_region
      _
    $region5: #{_mtloss_forward.1} parent=1 // pred_fallthru
      _
    // Predicated region
    $region6: #{_mtloss_forward.1} parent=1 // pred_check
      _
    $region7: #{_mtloss_forward.1} parent=1 // pred_check_branch
      %13 = sbr.rel (0) target = $region9
    $region8: #{_mtloss_forward.1} parent=1 // pred_region
      _
    $region9: #{_mtloss_forward.1} parent=1 // pred_fallthru
      _
    // Predicated region
    $region10: #{_mtloss_forward.1} parent=1 // pred_check
      _
    $region11: #{_mtloss_forward.1} parent=1 // pred_check_branch
      %15 = sbr.rel (0) target = $region13
    $region12: #{_mtloss_forward.1} parent=1 // pred_region
      %17 = vsyncadd [#allocation3], 0
      %s19 = sshll.u32 %s2, 4
      %s20 = int_to_ptr.hbm [resolvable:$true] %s19
      %s21 = sshll.u32 [#allocation2], 4
      %s22 = int_to_ptr.vmem [resolvable:$true] %s21
      %24 = dma.hbm_to_vmem [thread:$0]  %s20, 32, %s22, [#allocation3]
    $region13: #{_mtloss_forward.1} parent=1 // pred_fallthru
      _
    // Predicated region
    $region14: #{_mtloss_forward.1} parent=1 // pred_check
      _
    $region15: #{_mtloss_forward.1} parent=1 // pred_check_branch
      %26 = sbr.rel (0) target = $region17
    $region16: #{_mtloss_forward.1} parent=1 // pred_region
      %28 = dma.done [#allocation3], 32
    $region17: #{_mtloss_forward.1} parent=1 // pred_fallthru
      _
    %p29 = scmp.eq.s32.totalorder 0, 0
    // Predicated region
    $region18: #{_mtloss_forward.1} parent=1 // pred_check
      %p30 = pneg %p29
    $region19: #{_mtloss_forward.1} parent=1 // pred_check_branch
      %32 = sbr.rel (%p30) target = $region21
    $region20: #{_mtloss_forward.1} parent=1 // pred_region
      %s33 = scalar_lea.smem [#allocation5], 0
      %34 = sst [smem:[%s33]] 0.0
      %s35 = scalar_lea.smem [#allocation5], 1
      %36 = sst [smem:[%s35]] 0.0
      %s37 = scalar_lea.smem [#allocation5], 2
      %38 = sst [smem:[%s37]] 0.0
    $region21: #{_mtloss_forward.1} parent=1 // pred_fallthru
      _
    %v39 = vld [vmem:[%s1] sm:$0x3]
    %v40 = vld [vmem:[#allocation2] sm:$0x3]
    %v41 = vsub.f32 %v40, %v39
    %s42 = sld [smem:[#allocation5]]
    %v43 = vmul.f32 %v41, %v41
    %vm44 = vcmask 25600
    %v45 = vsel %vm44, %v43, 0.0
    %46 = vadd.xlane.f32.xlu0 %v45
    %v47 = vpop.xlane.xlu0 %46
    %v48 = vrot.slane %v47, 4
    %v49 = vadd.f32 %v47, %v48
    %v50 = vrot.slane %v49, 2
    %v51 = vadd.f32 %v49, %v50
    %v52 = vrot.slane %v51, 1
    %v53 = vadd.f32 %v51, %v52
    %s54 = vtos %v53
    %s55 = sadd.f32 %s42, %s54
    %s56 = scalar_lea.smem [#allocation5], 0
    %57 = sst [smem:[%s56]] %s55
    %v58 = vsel %vm44, %v39, -inf
    %59 = vmax.xlane.f32.xlu0 %v58
    %v60 = vpop.xlane.xlu0 %59
    %v61 = vsub.f32 %v39, %v60
    %v62 = vmul.f32 %v61, 1.442695
    %v63 = vpow.pop %v62
    %v64 = vsel %vm44, %v63, 0.0
    %65 = vadd.xlane.f32.xlu0 %v64
    %v66 = vpop.xlane.xlu0 %65
    %v67 = vld [vmem:[%s0] sm:$0x3]
    %v68 = vlaneseq
    %v69 = vand.u32 %v68, 127
    %70 = vset.pattern.permute.xlu0 0
    %71 = vperm.xlu0 %70, %v67
    %v72 = vpop.permute.xlu0 %71
    %vm73 = vcmp.eq.s32.totalorder %v69, %v72
    %v74 = vsel %vm73, 1, 0
    %v75 = vcvt.s32.f32 %v74
    %v76 = vlog2.pop %v66
    %v77 = vmul.f32 %v76, 0.6931472
    %v78 = vsub.f32 %v61, %v77
    %s79 = sld [smem:[#allocation5 + $0x2]]
    %v80 = vmul.f32 %v75, %v78
    %v81 = vsel %vm44, %v80, 0.0
    %82 = vadd.xlane.f32.xlu0 %v81
    %v83 = vpop.xlane.xlu0 %82
    %v84 = vrot.slane %v83, 4
    %v85 = vadd.f32 %v83, %v84
    %v86 = vrot.slane %v85, 2
    %v87 = vadd.f32 %v85, %v86
    %v88 = vrot.slane %v87, 1
    %v89 = vadd.f32 %v87, %v88
    %s90 = vtos %v89
    %s91 = ssub.f32 0.0, %s90
    %s92 = sadd.f32 %s79, %s91
    %s93 = scalar_lea.smem [#allocation5], 2
    %94 = sst [smem:[%s93]] %s92
    // Predicated region
    $region22: #{_mtloss_forward.1} parent=1 // pred_check
      _
    $region23: #{_mtloss_forward.1} parent=1 // pred_check_branch
      %96 = sbr.rel (0) target = $region25
    $region24: #{_mtloss_forward.1} parent=1 // pred_region
      %98 = vsyncadd [#allocation4], 0
      %s100 = sshll.u32 %s3, 4
      %s101 = int_to_ptr.vmem [resolvable:$true] %s100
      %103 = dma.smem_to_vmem [#allocation5], 16, %s101, [#allocation4]
    $region25: #{_mtloss_forward.1} parent=1 // pred_fallthru
      _
    // Predicated region
    $region26: #{_mtloss_forward.1} parent=1 // pred_check
      _
    $region27: #{_mtloss_forward.1} parent=1 // pred_check_branch
      %105 = sbr.rel (0) target = $region29
    $region28: #{_mtloss_forward.1} parent=1 // pred_region
      %107 = dma.done [#allocation4], 16
    $region29: #{_mtloss_forward.1} parent=1 // pred_fallthru
      _
    %108 = sfence
    %109 = vsyncpa [#allocation3], 1
    %110 = vsyncpa [#allocation4], 1

</llo_original>
